<compile_context>
chip_gen: v6e
topology: v6e:2x2x1
jax: 0.10.0
libtpu: 0.0.40
codegen_flags: <defaults>
</compile_context>

<pallas_src>
from functools import partial

import jax
import jax.numpy as jnp
from jax.experimental import pallas as pl
from jax.experimental.pallas import tpu as pltpu


def dqn_kernel(x_ref, w1_ref, b1_ref, w2_ref, b2_ref, w3_ref, b3_ref, out_ref):
    """DQN forward for one batch tile: Linear -> ReLU -> Linear -> ReLU -> Linear."""
    x = x_ref[...].astype(jnp.bfloat16)                              # in-kernel cast (VPU slot)
    h1 = jnp.dot(x, w1_ref[...], preferred_element_type=jnp.float32)
    h1 = jnp.maximum(h1 + b1_ref[...], 0.0)                          # f32 VPU
    h2 = jnp.dot(h1.astype(jnp.bfloat16), w2_ref[...],
                 preferred_element_type=jnp.float32)
    h2 = jnp.maximum(h2 + b2_ref[...], 0.0)                          # f32 VPU
    out = jnp.dot(h2.astype(jnp.bfloat16), w3_ref[...],
                  preferred_element_type=jnp.float32)
    out_ref[...] = (out + b3_ref[...]).astype(out_ref.dtype)         # lane-dense bf16 store


_TILE_CAP = 1024  # one step covers typical replay batches; larger batches pipeline


def _choose_tile_b(batch):
    """Batch tile: multiple of 16 (bf16 sublane packing); multiple of 256 for
    larger batches (fills the 256-wide MXU on v6e/v7x); capped at 1024 so very
    large batches still split into multiple pipelined / TC-parallel steps."""
    b16 = -(-batch // 16) * 16
    if b16 <= 256:
        return b16
    return min(-(-b16 // 256) * 256, _TILE_CAP)


def prepare_dqn_params(w1, b1, w2, b2, w3, b3):
    """One-time parameter prep (hoisted out of the per-call path):
    bf16 weights for the MXU, f32 (1, out) bias rows, and a final layer
    zero-padded to a lane-dense 128-wide output."""
    hidden, n_actions = w3.shape
    n_out_pad = pl.cdiv(n_actions, 128) * 128
    w3p = (jnp.zeros((hidden, n_out_pad), jnp.bfloat16)
           .at[:, :n_actions].set(w3.astype(jnp.bfloat16)))
    b3p = jnp.zeros((1, n_out_pad), jnp.float32).at[:, :n_actions].set(b3)
    params = (w1.astype(jnp.bfloat16), b1.astype(jnp.float32),
              w2.astype(jnp.bfloat16), b2.astype(jnp.float32),
              w3p, b3p)
    return params, n_actions


@partial(jax.jit, static_argnames=("n_actions",))
def dqn_forward(x, w1b, b1, w2b, b2, w3p, b3p, *, n_actions):
    B, n_obs = x.shape
    hidden = w1b.shape[1]
    n_out_pad = w3p.shape[1]

    tb = _choose_tile_b(B)
    Bp = pl.cdiv(B, tb) * tb
    if Bp != B:
        x = jnp.pad(x, ((0, Bp - B), (0, 0)))

    out = pl.pallas_call(
        dqn_kernel,
        out_shape=jax.ShapeDtypeStruct((Bp, n_out_pad), jnp.bfloat16),
        grid=(Bp // tb,),
        in_specs=[
            pl.BlockSpec((tb, n_obs), lambda i: (i, 0)),          # x tile (f32 in HBM)
            pl.BlockSpec((n_obs, hidden), lambda i: (0, 0)),      # W1 (resident, bf16)
            pl.BlockSpec((1, hidden), lambda i: (0, 0)),          # b1 (f32)
            pl.BlockSpec((hidden, hidden), lambda i: (0, 0)),     # W2 (resident, bf16)
            pl.BlockSpec((1, hidden), lambda i: (0, 0)),          # b2 (f32)
            pl.BlockSpec((hidden, n_out_pad), lambda i: (0, 0)),  # W3 (padded, bf16)
            pl.BlockSpec((1, n_out_pad), lambda i: (0, 0)),       # b3 (padded, f32)
        ],
        out_specs=pl.BlockSpec((tb, n_out_pad), lambda i: (i, 0)),
        compiler_params=pltpu.CompilerParams(
            dimension_semantics=("parallel",),
        ),
    )(x, w1b, b1, w2b, b2, w3p, b3p)

    # Tiny post-call op: slice off the batch/lane padding and restore f32.
    return out[:B, :n_actions].astype(jnp.float32)


def init_linear_params(key, in_features, out_features):
    """Deterministic init mimicking nn.Linear: U(-1/sqrt(in), 1/sqrt(in))."""
    k_w, k_b = jax.random.split(key)
    bound = 1.0 / jnp.sqrt(jnp.float32(in_features))
    # Stored as (in, out) so the kernel does x @ W.
    w = jax.random.uniform(
        k_w, (in_features, out_features), jnp.float32, -bound, bound
    )
    b = jax.random.uniform(k_b, (1, out_features), jnp.float32, -bound, bound)
    return w, b


def _ref_f32(x, w1, b1, w2, b2, w3, b3):
    h = jnp.maximum(x @ w1 + b1, 0.0)
    h = jnp.maximum(h @ w2 + b2, 0.0)
    return h @ w3 + b3


if __name__ == "__main__":
    n_observations = 32
    n_actions = 4
    hidden = 128
    batch = 200  # realistic replay-batch scale; exercises the pad/slice path

    key = jax.random.PRNGKey(0)
    k_x, k1, k2, k3 = jax.random.split(key, 4)

    x = jax.random.normal(k_x, (batch, n_observations), jnp.float32)
    w1, b1 = init_linear_params(k1, n_observations, hidden)
    w2, b2 = init_linear_params(k2, hidden, hidden)
    w3, b3 = init_linear_params(k3, hidden, n_actions)

    # One-time prep (bf16 casts + lane-dense padding), outside the call path.
    params, n_act = prepare_dqn_params(w1, b1, w2, b2, w3, b3)

    out = dqn_forward(x, *params, n_actions=n_act)
    out = jax.block_until_ready(out)
    assert out.shape == (batch, n_actions)

    # Reference 1: same bf16-at-the-MXU dtype path as the kernel (bf16 output
    # rounding adds at most ~0.4% relative error).
    def bf16_dot(a, w):
        return jnp.dot(a.astype(jnp.bfloat16), w.astype(jnp.bfloat16),
                       preferred_element_type=jnp.float32)

    h = jnp.maximum(bf16_dot(x, w1) + b1, 0.0)
    h = jnp.maximum(bf16_dot(h, w2) + b2, 0.0)
    ref_bf16 = bf16_dot(h, w3) + b3
    assert jnp.allclose(out, ref_bf16, atol=1e-2, rtol=1e-2)

    # Reference 2: full-f32 forward semantics (loose tolerance for bf16 path).
    assert jnp.allclose(out, _ref_f32(x, w1, b1, w2, b2, w3, b3),
                        atol=5e-2, rtol=5e-2)

    # Small-batch path (action selection, B not a multiple of 16).
    x_small = jax.random.normal(jax.random.PRNGKey(1), (3, n_observations),
                                jnp.float32)
    out_small = jax.block_until_ready(
        dqn_forward(x_small, *params, n_actions=n_act))
    assert out_small.shape == (3, n_actions)
    assert jnp.allclose(out_small, _ref_f32(x_small, w1, b1, w2, b2, w3, b3),
                        atol=5e-2, rtol=5e-2)

    print("KERNEL_OK")
</pallas_src>

<mosaic_0001>
module attributes {stable_mosaic.version = 11 : i64} {
  func.func @dqn_kernel(%arg0: i32, %arg1: memref<208x32xf32, #tpu.memory_space<vmem>>, %arg2: memref<32x128xbf16, #tpu.memory_space<vmem>>, %arg3: memref<1x128xf32, #tpu.memory_space<vmem>>, %arg4: memref<128x128xbf16, #tpu.memory_space<vmem>>, %arg5: memref<1x128xf32, #tpu.memory_space<vmem>>, %arg6: memref<128x128xbf16, #tpu.memory_space<vmem>>, %arg7: memref<1x128xf32, #tpu.memory_space<vmem>>, %arg8: memref<208x128xbf16, #tpu.memory_space<vmem>>) attributes {dimension_semantics = [#tpu.dimension_semantics<parallel>], iteration_bounds = array<i64: 1>, scalar_prefetch = 0 : i64, scratch_operands = 0 : i64, tpu.core_type = #tpu.core_type<tc>, window_params = [{transform_indices = @transform_0, window_bounds = array<i64: 208, 32>}, {pipeline_mode = #tpu.pipeline_mode<synchronous>, transform_indices = @transform_1, window_bounds = array<i64: 32, 128>}, {pipeline_mode = #tpu.pipeline_mode<synchronous>, transform_indices = @transform_2, window_bounds = array<i64: 1, 128>}, {pipeline_mode = #tpu.pipeline_mode<synchronous>, transform_indices = @transform_3, window_bounds = array<i64: 128, 128>}, {pipeline_mode = #tpu.pipeline_mode<synchronous>, transform_indices = @transform_4, window_bounds = array<i64: 1, 128>}, {pipeline_mode = #tpu.pipeline_mode<synchronous>, transform_indices = @transform_5, window_bounds = array<i64: 128, 128>}, {pipeline_mode = #tpu.pipeline_mode<synchronous>, transform_indices = @transform_6, window_bounds = array<i64: 1, 128>}, {transform_indices = @transform_7, window_bounds = array<i64: 208, 128>}]} {
    %c0 = arith.constant 0 : index
    %c0_0 = arith.constant 0 : index
    %0 = vector.load %arg1[%c0, %c0_0] : memref<208x32xf32, #tpu.memory_space<vmem>>, vector<208x32xf32>
    %1 = arith.truncf %0 : vector<208x32xf32> to vector<208x32xbf16>
    %c0_1 = arith.constant 0 : index
    %c0_2 = arith.constant 0 : index
    %2 = vector.load %arg2[%c0_1, %c0_2] : memref<32x128xbf16, #tpu.memory_space<vmem>>, vector<32x128xbf16>
    %cst = arith.constant dense<0.000000e+00> : vector<208x128xf32>
    %3 = tpu.matmul %1, %2, %cst {dimension_numbers = #tpu.dot_dimension_numbers<[1], [0], [0], [1], [0, 0, 1, 1], [], []>} : vector<208x32xbf16>, vector<32x128xbf16>, vector<208x128xf32> -> vector<208x128xf32>
    %c0_3 = arith.constant 0 : index
    %c0_4 = arith.constant 0 : index
    %4 = vector.load %arg3[%c0_3, %c0_4] : memref<1x128xf32, #tpu.memory_space<vmem>>, vector<1x128xf32>
    %5 = vector.broadcast %4 : vector<1x128xf32> to vector<208x128xf32>
    %6 = arith.addf %3, %5 : vector<208x128xf32>
    %cst_5 = arith.constant 0.000000e+00 : f32
    %7 = vector.broadcast %cst_5 : f32 to vector<208x128xf32>
    %8 = arith.maximumf %6, %7 : vector<208x128xf32>
    %9 = arith.truncf %8 : vector<208x128xf32> to vector<208x128xbf16>
    %c0_6 = arith.constant 0 : index
    %c0_7 = arith.constant 0 : index
    %10 = vector.load %arg4[%c0_6, %c0_7] : memref<128x128xbf16, #tpu.memory_space<vmem>>, vector<128x128xbf16>
    %cst_8 = arith.constant dense<0.000000e+00> : vector<208x128xf32>
    %11 = tpu.matmul %9, %10, %cst_8 {dimension_numbers = #tpu.dot_dimension_numbers<[1], [0], [0], [1], [0, 0, 1, 1], [], []>} : vector<208x128xbf16>, vector<128x128xbf16>, vector<208x128xf32> -> vector<208x128xf32>
    %c0_9 = arith.constant 0 : index
    %c0_10 = arith.constant 0 : index
    %12 = vector.load %arg5[%c0_9, %c0_10] : memref<1x128xf32, #tpu.memory_space<vmem>>, vector<1x128xf32>
    %13 = vector.broadcast %12 : vector<1x128xf32> to vector<208x128xf32>
    %14 = arith.addf %11, %13 : vector<208x128xf32>
    %cst_11 = arith.constant 0.000000e+00 : f32
    %15 = vector.broadcast %cst_11 : f32 to vector<208x128xf32>
    %16 = arith.maximumf %14, %15 : vector<208x128xf32>
    %17 = arith.truncf %16 : vector<208x128xf32> to vector<208x128xbf16>
    %c0_12 = arith.constant 0 : index
    %c0_13 = arith.constant 0 : index
    %18 = vector.load %arg6[%c0_12, %c0_13] : memref<128x128xbf16, #tpu.memory_space<vmem>>, vector<128x128xbf16>
    %cst_14 = arith.constant dense<0.000000e+00> : vector<208x128xf32>
    %19 = tpu.matmul %17, %18, %cst_14 {dimension_numbers = #tpu.dot_dimension_numbers<[1], [0], [0], [1], [0, 0, 1, 1], [], []>} : vector<208x128xbf16>, vector<128x128xbf16>, vector<208x128xf32> -> vector<208x128xf32>
    %c0_15 = arith.constant 0 : index
    %c0_16 = arith.constant 0 : index
    %20 = vector.load %arg7[%c0_15, %c0_16] : memref<1x128xf32, #tpu.memory_space<vmem>>, vector<1x128xf32>
    %21 = vector.broadcast %20 : vector<1x128xf32> to vector<208x128xf32>
    %22 = arith.addf %19, %21 : vector<208x128xf32>
    %23 = arith.truncf %22 : vector<208x128xf32> to vector<208x128xbf16>
    %c0_17 = arith.constant 0 : index
    %c0_18 = arith.constant 0 : index
    %24 = vector.load %arg8[%c0_17, %c0_18] : memref<208x128xbf16, #tpu.memory_space<vmem>>, vector<208x128xbf16>
    tpu.vector_store %arg8[%c0_17, %c0_18], %23 {strides = array<i32>} : memref<208x128xbf16, #tpu.memory_space<vmem>>, vector<208x128xbf16>,
    return
  }
  func.func @transform_0(%arg0: i32) -> (i32, i32) {
    %c0_i32 = arith.constant 0 : i32
    %c0_i32_0 = arith.constant 0 : i32
    return %arg0, %c0_i32 : i32, i32
  }
  func.func @transform_1(%arg0: i32) -> (i32, i32) {
    %c0_i32 = arith.constant 0 : i32
    %c0_i32_0 = arith.constant 0 : i32
    %c0_i32_1 = arith.constant 0 : i32
    return %c0_i32, %c0_i32_0 : i32, i32
  }
  func.func @transform_2(%arg0: i32) -> (i32, i32) {
    %c0_i32 = arith.constant 0 : i32
    %c0_i32_0 = arith.constant 0 : i32
    %c0_i32_1 = arith.constant 0 : i32
    return %c0_i32, %c0_i32_0 : i32, i32
  }
  func.func @transform_3(%arg0: i32) -> (i32, i32) {
    %c0_i32 = arith.constant 0 : i32
    %c0_i32_0 = arith.constant 0 : i32
    %c0_i32_1 = arith.constant 0 : i32
    return %c0_i32, %c0_i32_0 : i32, i32
  }
  func.func @transform_4(%arg0: i32) -> (i32, i32) {
    %c0_i32 = arith.constant 0 : i32
    %c0_i32_0 = arith.constant 0 : i32
    %c0_i32_1 = arith.constant 0 : i32
    return %c0_i32, %c0_i32_0 : i32, i32
  }
  func.func @transform_5(%arg0: i32) -> (i32, i32) {
    %c0_i32 = arith.constant 0 : i32
    %c0_i32_0 = arith.constant 0 : i32
    %c0_i32_1 = arith.constant 0 : i32
    return %c0_i32, %c0_i32_0 : i32, i32
  }
  func.func @transform_6(%arg0: i32) -> (i32, i32) {
    %c0_i32 = arith.constant 0 : i32
    %c0_i32_0 = arith.constant 0 : i32
    %c0_i32_1 = arith.constant 0 : i32
    return %c0_i32, %c0_i32_0 : i32, i32
  }
  func.func @transform_7(%arg0: i32) -> (i32, i32) {
    %c0_i32 = arith.constant 0 : i32
    %c0_i32_0 = arith.constant 0 : i32
    return %arg0, %c0_i32 : i32, i32
  }
}

</mosaic_0001>

<llo_original>
// kernel: dqn_forward.1
$region0: #{dqn_forward.1}
  #allocation0 [shape = 'u32[]', space=smem, size = 0x4, offset = 0x4, fixed_abs, tag = 'smem constant byte address 0x4 - core index']
  #allocation1 [shape = 'u32[144,128]{1,0:T(1,128)}', space=vmem, size = 0x12000, scoped, tag = 'internal scratch']
  %s0 = inlined_call_operand.vmem [shape: f32[208,32], index: 0, kind: input, shape index: {}]
  %s1 = inlined_call_operand.vmem [shape: bf16[32,128], index: 1, kind: input, shape index: {}]
  %s2 = inlined_call_operand.vmem [shape: f32[1,128], index: 2, kind: input, shape index: {}]
  %s3 = inlined_call_operand.vmem [shape: bf16[128,128], index: 3, kind: input, shape index: {}]
  %s4 = inlined_call_operand.vmem [shape: f32[1,128], index: 4, kind: input, shape index: {}]
  %s5 = inlined_call_operand.vmem [shape: bf16[128,128], index: 5, kind: input, shape index: {}]
  %s6 = inlined_call_operand.vmem [shape: f32[1,128], index: 6, kind: input, shape index: {}]
  %s7 = inlined_call_operand.vmem [shape: bf16[208,128], index: 7, kind: output, shape index: {}]
  %s8 = sld [smem:[#allocation0]]
  $region38: #{dqn_forward.1} parent=0
    _
  %s10 = ssub.s32 1, %s8
  %s11 = scalar_select 0, %s10, %s8
  // Predicated region
  $region2: #{dqn_forward.1} parent=0 // pred_check
    _
  $region3: #{dqn_forward.1} parent=0 // pred_check_branch
    %13 = sbr.rel (0) target = $region5
  $region4: #{dqn_forward.1} parent=0 // pred_region
    _
  $region5: #{dqn_forward.1} parent=0 // pred_fallthru
    _
  // Predicated region
  $region6: #{dqn_forward.1} parent=0 // pred_check
    _
  $region7: #{dqn_forward.1} parent=0 // pred_check_branch
    %15 = sbr.rel (0) target = $region9
  $region8: #{dqn_forward.1} parent=0 // pred_region
    _
  $region9: #{dqn_forward.1} parent=0 // pred_fallthru
    _
  // Predicated region
  $region10: #{dqn_forward.1} parent=0 // pred_check
    _
  $region11: #{dqn_forward.1} parent=0 // pred_check_branch
    %17 = sbr.rel (0) target = $region13
  $region12: #{dqn_forward.1} parent=0 // pred_region
    _
  $region13: #{dqn_forward.1} parent=0 // pred_fallthru
    _
  // Predicated region
  $region14: #{dqn_forward.1} parent=0 // pred_check
    _
  $region15: #{dqn_forward.1} parent=0 // pred_check_branch
    %19 = sbr.rel (0) target = $region17
  $region16: #{dqn_forward.1} parent=0 // pred_region
    _
  $region17: #{dqn_forward.1} parent=0 // pred_fallthru
    _
  // Predicated region
  $region18: #{dqn_forward.1} parent=0 // pred_check
    _
  $region19: #{dqn_forward.1} parent=0 // pred_check_branch
    %21 = sbr.rel (0) target = $region21
  $region20: #{dqn_forward.1} parent=0 // pred_region
    _
  $region21: #{dqn_forward.1} parent=0 // pred_fallthru
    _
  // Predicated region
  $region22: #{dqn_forward.1} parent=0 // pred_check
    _
  $region23: #{dqn_forward.1} parent=0 // pred_check_branch
    %23 = sbr.rel (0) target = $region25
  $region24: #{dqn_forward.1} parent=0 // pred_region
    _
  $region25: #{dqn_forward.1} parent=0 // pred_fallthru
    _
  // Predicated region
  $region26: #{dqn_forward.1} parent=0 // pred_check
    _
  $region27: #{dqn_forward.1} parent=0 // pred_check_branch
    %25 = sbr.rel (0) target = $region29
  $region28: #{dqn_forward.1} parent=0 // pred_region
    _
  $region29: #{dqn_forward.1} parent=0 // pred_fallthru
    _
  %v27 = vld [vmem:[%s0] sm:$0xff]
  %v28 = vld [vmem:[%s0 + $0x8] sm:$0xff]
  %v29 = vld [vmem:[%s0 + $0x10] sm:$0xff]
  %v30 = vld [vmem:[%s0 + $0x18] sm:$0xff]
  %v31 = vld [vmem:[%s0 + $0x20] sm:$0xff]
  %v32 = vld [vmem:[%s0 + $0x28] sm:$0xff]
  %v33 = vld [vmem:[%s0 + $0x30] sm:$0xff]
  %v34 = vld [vmem:[%s0 + $0x38] sm:$0xff]
  %v35 = vld [vmem:[%s0 + $0x40] sm:$0xff]
  %v36 = vld [vmem:[%s0 + $0x48] sm:$0xff]
  %v37 = vld [vmem:[%s0 + $0x50] sm:$0xff]
  %v38 = vld [vmem:[%s0 + $0x58] sm:$0xff]
  %v39 = vld [vmem:[%s0 + $0x60] sm:$0xff]
  %v40 = vld [vmem:[%s0 + $0x68] sm:$0xff]
  %v41 = vld [vmem:[%s0 + $0x70] sm:$0xff]
  %v42 = vld [vmem:[%s0 + $0x78] sm:$0xff]
  %v43 = vld [vmem:[%s0 + $0x80] sm:$0xff]
  %v44 = vld [vmem:[%s0 + $0x88] sm:$0xff]
  %v45 = vld [vmem:[%s0 + $0x90] sm:$0xff]
  %v46 = vld [vmem:[%s0 + $0x98] sm:$0xff]
  %v47 = vld [vmem:[%s0 + $0xa0] sm:$0xff]
  %v48 = vld [vmem:[%s0 + $0xa8] sm:$0xff]
  %v49 = vld [vmem:[%s0 + $0xb0] sm:$0xff]
  %v50 = vld [vmem:[%s0 + $0xb8] sm:$0xff]
  %v51 = vld [vmem:[%s0 + $0xc0] sm:$0xff]
  %v52 = vld [vmem:[%s0 + $0xc8] sm:$0xff]
  %v53 = vpack.c.bf16 %v28, %v27
  %v54 = vpack.c.bf16 %v30, %v29
  %v55 = vpack.c.bf16 %v32, %v31
  %v56 = vpack.c.bf16 %v34, %v33
  %v57 = vpack.c.bf16 %v36, %v35
  %v58 = vpack.c.bf16 %v38, %v37
  %v59 = vpack.c.bf16 %v40, %v39
  %v60 = vpack.c.bf16 %v42, %v41
  %v61 = vpack.c.bf16 %v44, %v43
  %v62 = vpack.c.bf16 %v46, %v45
  %v63 = vpack.c.bf16 %v48, %v47
  %v64 = vpack.c.bf16 %v50, %v49
  %v65 = vpack.c.bf16 %v52, %v51
  %v66 = vld [vmem:[%s1] sm:$0xf]
  %v67 = vld [vmem:[%s1 + $0x4] sm:$0xf]
  %v68 = vld [vmem:[%s1 + $0x8] sm:$0xf]
  %v69 = vld [vmem:[%s1 + $0xc] sm:$0xf]
  %v70 = vld [vmem:[%s2] sm:$0x1]
  %v72 = vlaneseq
  %v73 = vshrl.u32 %v72, 7
  %v74 = vsub.s32 0, %v73
  %v75 = vrot.slane %v70, %v74
  %v81 = vunpack.c.l.b16 %v66
  %v82 = vunpack.c.l.b16 %v67
  %v83 = vunpack.c.l.b16 %v68
  %v84 = vunpack.c.l.b16 %v69
  %v85 = vpack.c.b16 %v82, %v81
  %v86 = vpack.c.b16 %v84, %v83
  %vm89 = vcmask 261120
  %v91 = vsel %vm89, %v53, 0
  %v94 = vsel %vm89, %v54, 0
  %v97 = vsel %vm89, %v55, 0
  %v100 = vsel %vm89, %v56, 0
  %v103 = vsel %vm89, %v57, 0
  %v106 = vsel %vm89, %v58, 0
  %v109 = vsel %vm89, %v59, 0
  %v112 = vsel %vm89, %v60, 0
  %v115 = vsel %vm89, %v61, 0
  %v118 = vsel %vm89, %v62, 0
  %v121 = vsel %vm89, %v63, 0
  %v124 = vsel %vm89, %v64, 0
  %v127 = vsel %vm89, %v65, 0
  %129 = vmatprep.subr.bf16.mxu0 0
  %130 = vmatpush1.bf16.msra.mxu0 0
  %131 = vmatprep.subr.bf16.mxu0 0
  %132 = vmatpush1.bf16.msra.mxu0 0
  %133 = vmatprep.subr.bf16.mxu0 0
  %134 = vmatpush1.bf16.msra.mxu0 0
  %135 = vmatprep.subr.bf16.mxu0 0
  %136 = vmatpush1.bf16.msra.mxu0 0
  %137 = vmatprep.subr.bf16.mxu0 0
  %138 = vmatpush1.bf16.msra.mxu0 0
  %139 = vmatprep.subr.bf16.mxu0 0
  %140 = vmatpush1.bf16.msra.mxu0 0
  %141 = vmatprep.subr.bf16.mxu0 0
  %142 = vmatpush1.bf16.msra.mxu0 %v86
  %143 = vmatprep.subr.bf16.mxu0 0
  %144 = vmatpush1.bf16.msra.mxu0 %v85
  %145 = vmatprep.subr.bf16.mxu0 0
  %146 = vmatpush2.bf16.msra.mxu0 0
  %147 = vmatprep.subr.bf16.mxu0 0
  %148 = vmatpush2.bf16.msra.mxu0 0
  %149 = vmatprep.subr.bf16.mxu0 0
  %150 = vmatpush2.bf16.msra.mxu0 0
  %151 = vmatprep.subr.bf16.mxu0 0
  %152 = vmatpush2.bf16.msra.mxu0 0
  %153 = vmatprep.subr.bf16.mxu0 0
  %154 = vmatpush2.bf16.msra.mxu0 0
  %155 = vmatprep.subr.bf16.mxu0 0
  %156 = vmatpush2.bf16.msra.mxu0 0
  %157 = vmatprep.subr.bf16.mxu0 0
  %158 = vmatpush2.bf16.msra.mxu0 0
  %159 = vmatprep.subr.bf16.mxu0 0
  %160 = vmatpush2.bf16.msra.mxu0 0
  %161 = vmatprep.mubr.bf16.mxu0 0
  %162 = vmatmul.mubr.bf16.gmra.mxu0 %v91
  %v163 = vpop.f32.mrf.mxu0
  %v164 = vadd.f32 %v75, %v163
  %v165 = vpop.f32.mrf.mxu0
  %v166 = vpop.f32.mrf.mxu0
  %v167 = vadd.f32 %v75, %v166
  %v168 = vpop.f32.mrf.mxu0
  %169 = vmatprep.mubr.bf16.mxu0 0
  %170 = vmatmul.mubr.bf16.gmra.mxu0 %v94
  %v171 = vpop.f32.mrf.mxu0
  %v172 = vadd.f32 %v75, %v171
  %v173 = vpop.f32.mrf.mxu0
  %v174 = vpop.f32.mrf.mxu0
  %v175 = vadd.f32 %v75, %v174
  %v176 = vpop.f32.mrf.mxu0
  %177 = vmatprep.mubr.bf16.mxu0 0
  %178 = vmatmul.mubr.bf16.gmra.mxu0 %v97
  %v179 = vpop.f32.mrf.mxu0
  %v180 = vadd.f32 %v75, %v179
  %v181 = vpop.f32.mrf.mxu0
  %v182 = vpop.f32.mrf.mxu0
  %v183 = vadd.f32 %v75, %v182
  %v184 = vpop.f32.mrf.mxu0
  %185 = vmatprep.mubr.bf16.mxu0 0
  %186 = vmatmul.mubr.bf16.gmra.mxu0 %v100
  %v187 = vpop.f32.mrf.mxu0
  %v188 = vadd.f32 %v75, %v187
  %v189 = vpop.f32.mrf.mxu0
  %v190 = vpop.f32.mrf.mxu0
  %v191 = vadd.f32 %v75, %v190
  %v192 = vpop.f32.mrf.mxu0
  %193 = vmatprep.mubr.bf16.mxu0 0
  %194 = vmatmul.mubr.bf16.gmra.mxu0 %v103
  %v195 = vpop.f32.mrf.mxu0
  %v196 = vadd.f32 %v75, %v195
  %v197 = vpop.f32.mrf.mxu0
  %v198 = vpop.f32.mrf.mxu0
  %v199 = vadd.f32 %v75, %v198
  %v200 = vpop.f32.mrf.mxu0
  %201 = vmatprep.mubr.bf16.mxu0 0
  %202 = vmatmul.mubr.bf16.gmra.mxu0 %v106
  %v203 = vpop.f32.mrf.mxu0
  %v204 = vadd.f32 %v75, %v203
  %v205 = vpop.f32.mrf.mxu0
  %v206 = vpop.f32.mrf.mxu0
  %v207 = vadd.f32 %v75, %v206
  %v208 = vpop.f32.mrf.mxu0
  %209 = vmatprep.mubr.bf16.mxu0 0
  %210 = vmatmul.mubr.bf16.gmra.mxu0 %v109
  %v211 = vpop.f32.mrf.mxu0
  %v212 = vadd.f32 %v75, %v211
  %v213 = vpop.f32.mrf.mxu0
  %v214 = vpop.f32.mrf.mxu0
  %v215 = vadd.f32 %v75, %v214
  %v216 = vpop.f32.mrf.mxu0
  %217 = vmatprep.mubr.bf16.mxu0 0
  %218 = vmatmul.mubr.bf16.gmra.mxu0 %v112
  %v219 = vpop.f32.mrf.mxu0
  %v220 = vadd.f32 %v75, %v219
  %v221 = vpop.f32.mrf.mxu0
  %v222 = vpop.f32.mrf.mxu0
  %v223 = vadd.f32 %v75, %v222
  %v224 = vpop.f32.mrf.mxu0
  %225 = vmatprep.mubr.bf16.mxu0 0
  %226 = vmatmul.mubr.bf16.gmra.mxu0 %v115
  %v227 = vpop.f32.mrf.mxu0
  %v228 = vadd.f32 %v75, %v227
  %v229 = vpop.f32.mrf.mxu0
  %v230 = vpop.f32.mrf.mxu0
  %v231 = vadd.f32 %v75, %v230
  %v232 = vpop.f32.mrf.mxu0
  %233 = vmatprep.mubr.bf16.mxu0 0
  %234 = vmatmul.mubr.bf16.gmra.mxu0 %v118
  %v235 = vpop.f32.mrf.mxu0
  %v236 = vadd.f32 %v75, %v235
  %v237 = vpop.f32.mrf.mxu0
  %v238 = vpop.f32.mrf.mxu0
  %v239 = vadd.f32 %v75, %v238
  %v240 = vpop.f32.mrf.mxu0
  %241 = vmatprep.mubr.bf16.mxu0 0
  %242 = vmatmul.mubr.bf16.gmra.mxu0 %v121
  %v243 = vpop.f32.mrf.mxu0
  %v244 = vadd.f32 %v75, %v243
  %v245 = vpop.f32.mrf.mxu0
  %v246 = vpop.f32.mrf.mxu0
  %v247 = vadd.f32 %v75, %v246
  %v248 = vpop.f32.mrf.mxu0
  %249 = vmatprep.mubr.bf16.mxu0 0
  %250 = vmatmul.mubr.bf16.gmra.mxu0 %v124
  %v251 = vpop.f32.mrf.mxu0
  %v252 = vadd.f32 %v75, %v251
  %v253 = vpop.f32.mrf.mxu0
  %v254 = vpop.f32.mrf.mxu0
  %v255 = vadd.f32 %v75, %v254
  %v256 = vpop.f32.mrf.mxu0
  %257 = vmatprep.mubr.bf16.mxu0 0
  %258 = vmatmul.mubr.bf16.gmra.mxu0 %v127
  %v259 = vpop.f32.mrf.mxu0
  %v260 = vadd.f32 %v75, %v259
  %v261 = vpop.f32.mrf.mxu0
  %v262 = vpop.f32.mrf.mxu0
  %v263 = vadd.f32 %v75, %v262
  %v264 = vpop.f32.mrf.mxu0
  %265 = vdwg.mxu0
  %v266 = vmax.f32 %v164, 0.0
  %v267 = vmax.f32 %v167, 0.0
  %v268 = vmax.f32 %v172, 0.0
  %v269 = vmax.f32 %v175, 0.0
  %v270 = vmax.f32 %v180, 0.0
  %v271 = vmax.f32 %v183, 0.0
  %v272 = vmax.f32 %v188, 0.0
  %v273 = vmax.f32 %v191, 0.0
  %v274 = vmax.f32 %v196, 0.0
  %v275 = vmax.f32 %v199, 0.0
  %v276 = vmax.f32 %v204, 0.0
  %v277 = vmax.f32 %v207, 0.0
  %v278 = vmax.f32 %v212, 0.0
  %v279 = vmax.f32 %v215, 0.0
  %v280 = vmax.f32 %v220, 0.0
  %v281 = vmax.f32 %v223, 0.0
  %v282 = vmax.f32 %v228, 0.0
  %v283 = vmax.f32 %v231, 0.0
  %v284 = vmax.f32 %v236, 0.0
  %v285 = vmax.f32 %v239, 0.0
  %v286 = vmax.f32 %v244, 0.0
  %v287 = vmax.f32 %v247, 0.0
  %v288 = vmax.f32 %v252, 0.0
  %v289 = vmax.f32 %v255, 0.0
  %v290 = vmax.f32 %v260, 0.0
  %v291 = vmax.f32 %v263, 0.0
  %v292 = vpack.c.bf16 %v267, %v266
  %v293 = vpack.c.bf16 %v269, %v268
  %v294 = vpack.c.bf16 %v271, %v270
  %v295 = vpack.c.bf16 %v273, %v272
  %v296 = vpack.c.bf16 %v275, %v274
  %v297 = vpack.c.bf16 %v277, %v276
  %v298 = vpack.c.bf16 %v279, %v278
  %v299 = vpack.c.bf16 %v281, %v280
  %v300 = vpack.c.bf16 %v283, %v282
  %v301 = vpack.c.bf16 %v285, %v284
  %v302 = vpack.c.bf16 %v287, %v286
  %v303 = vpack.c.bf16 %v289, %v288
  %v304 = vpack.c.bf16 %v291, %v290
  %v305 = vld [vmem:[%s3] sm:$0xf]
  %v306 = vld [vmem:[%s3 + $0x4] sm:$0xf]
  %v307 = vld [vmem:[%s3 + $0x8] sm:$0xf]
  %v308 = vld [vmem:[%s3 + $0xc] sm:$0xf]
  %v309 = vld [vmem:[%s3 + $0x10] sm:$0xf]
  %v310 = vld [vmem:[%s3 + $0x14] sm:$0xf]
  %v311 = vld [vmem:[%s3 + $0x18] sm:$0xf]
  %v312 = vld [vmem:[%s3 + $0x1c] sm:$0xf]
  %v313 = vld [vmem:[%s3 + $0x20] sm:$0xf]
  %v314 = vld [vmem:[%s3 + $0x24] sm:$0xf]
  %v315 = vld [vmem:[%s3 + $0x28] sm:$0xf]
  %v316 = vld [vmem:[%s3 + $0x2c] sm:$0xf]
  %v317 = vld [vmem:[%s3 + $0x30] sm:$0xf]
  %v318 = vld [vmem:[%s3 + $0x34] sm:$0xf]
  %v319 = vld [vmem:[%s3 + $0x38] sm:$0xf]
  %v320 = vld [vmem:[%s3 + $0x3c] sm:$0xf]
  %v321 = vld [vmem:[%s4] sm:$0x1]
  %v323 = vlaneseq
  %v324 = vshrl.u32 %v323, 7
  %v325 = vsub.s32 0, %v324
  %v326 = vrot.slane %v321, %v325
  %v344 = vunpack.c.l.b16 %v305
  %v345 = vunpack.c.l.b16 %v306
  %v346 = vunpack.c.l.b16 %v307
  %v347 = vunpack.c.l.b16 %v308
  %v348 = vunpack.c.l.b16 %v309
  %v349 = vunpack.c.l.b16 %v310
  %v350 = vunpack.c.l.b16 %v311
  %v351 = vunpack.c.l.b16 %v312
  %v352 = vunpack.c.l.b16 %v313
  %v353 = vunpack.c.l.b16 %v314
  %v354 = vunpack.c.l.b16 %v315
  %v355 = vunpack.c.l.b16 %v316
  %v356 = vunpack.c.l.b16 %v317
  %v357 = vunpack.c.l.b16 %v318
  %v358 = vunpack.c.l.b16 %v319
  %v359 = vunpack.c.l.b16 %v320
  %v360 = vpack.c.b16 %v345, %v344
  %v361 = vpack.c.b16 %v347, %v346
  %v362 = vpack.c.b16 %v349, %v348
  %v363 = vpack.c.b16 %v351, %v350
  %v364 = vpack.c.b16 %v353, %v352
  %v365 = vpack.c.b16 %v355, %v354
  %v366 = vpack.c.b16 %v357, %v356
  %v367 = vpack.c.b16 %v359, %v358
  %376 = vmatprep.subr.bf16.mxu0 0
  %377 = vmatpush1.bf16.msra.mxu0 %v367
  %378 = vmatprep.subr.bf16.mxu0 0
  %379 = vmatpush1.bf16.msra.mxu0 %v366
  %380 = vmatprep.subr.bf16.mxu0 0
  %381 = vmatpush1.bf16.msra.mxu0 %v365
  %382 = vmatprep.subr.bf16.mxu0 0
  %383 = vmatpush1.bf16.msra.mxu0 %v364
  %384 = vmatprep.subr.bf16.mxu0 0
  %385 = vmatpush1.bf16.msra.mxu0 %v363
  %386 = vmatprep.subr.bf16.mxu0 0
  %387 = vmatpush1.bf16.msra.mxu0 %v362
  %388 = vmatprep.subr.bf16.mxu0 0
  %389 = vmatpush1.bf16.msra.mxu0 %v361
  %390 = vmatprep.subr.bf16.mxu0 0
  %391 = vmatpush1.bf16.msra.mxu0 %v360
  %392 = vmatprep.subr.bf16.mxu0 0
  %393 = vmatpush2.bf16.msra.mxu0 0
  %394 = vmatprep.subr.bf16.mxu0 0
  %395 = vmatpush2.bf16.msra.mxu0 0
  %396 = vmatprep.subr.bf16.mxu0 0
  %397 = vmatpush2.bf16.msra.mxu0 0
  %398 = vmatprep.subr.bf16.mxu0 0
  %399 = vmatpush2.bf16.msra.mxu0 0
  %400 = vmatprep.subr.bf16.mxu0 0
  %401 = vmatpush2.bf16.msra.mxu0 0
  %402 = vmatprep.subr.bf16.mxu0 0
  %403 = vmatpush2.bf16.msra.mxu0 0
  %404 = vmatprep.subr.bf16.mxu0 0
  %405 = vmatpush2.bf16.msra.mxu0 0
  %406 = vmatprep.subr.bf16.mxu0 0
  %407 = vmatpush2.bf16.msra.mxu0 0
  %408 = vmatprep.mubr.bf16.mxu0 0
  %409 = vmatmul.mubr.bf16.gmra.mxu0 %v292
  %v410 = vpop.f32.mrf.mxu0
  %v411 = vadd.f32 %v326, %v410
  %v412 = vpop.f32.mrf.mxu0
  %v413 = vpop.f32.mrf.mxu0
  %v414 = vadd.f32 %v326, %v413
  %v415 = vpop.f32.mrf.mxu0
  %416 = vmatprep.mubr.bf16.mxu0 0
  %417 = vmatmul.mubr.bf16.gmra.mxu0 %v293
  %v418 = vpop.f32.mrf.mxu0
  %v419 = vadd.f32 %v326, %v418
  %v420 = vpop.f32.mrf.mxu0
  %v421 = vpop.f32.mrf.mxu0
  %v422 = vadd.f32 %v326, %v421
  %v423 = vpop.f32.mrf.mxu0
  %424 = vmatprep.mubr.bf16.mxu0 0
  %425 = vmatmul.mubr.bf16.gmra.mxu0 %v294
  %v426 = vpop.f32.mrf.mxu0
  %v427 = vadd.f32 %v326, %v426
  %v428 = vpop.f32.mrf.mxu0
  %v429 = vpop.f32.mrf.mxu0
  %v430 = vadd.f32 %v326, %v429
  %v431 = vpop.f32.mrf.mxu0
  %432 = vmatprep.mubr.bf16.mxu0 0
  %433 = vmatmul.mubr.bf16.gmra.mxu0 %v295
  %v434 = vpop.f32.mrf.mxu0
  %v435 = vadd.f32 %v326, %v434
  %v436 = vpop.f32.mrf.mxu0
  %v437 = vpop.f32.mrf.mxu0
  %v438 = vadd.f32 %v326, %v437
  %v439 = vpop.f32.mrf.mxu0
  %440 = vmatprep.mubr.bf16.mxu0 0
  %441 = vmatmul.mubr.bf16.gmra.mxu0 %v296
  %v442 = vpop.f32.mrf.mxu0
  %v443 = vadd.f32 %v326, %v442
  %v444 = vpop.f32.mrf.mxu0
  %v445 = vpop.f32.mrf.mxu0
  %v446 = vadd.f32 %v326, %v445
  %v447 = vpop.f32.mrf.mxu0
  %448 = vmatprep.mubr.bf16.mxu0 0
  %449 = vmatmul.mubr.bf16.gmra.mxu0 %v297
  %v450 = vpop.f32.mrf.mxu0
  %v451 = vadd.f32 %v326, %v450
  %v452 = vpop.f32.mrf.mxu0
  %v453 = vpop.f32.mrf.mxu0
  %v454 = vadd.f32 %v326, %v453
  %v455 = vpop.f32.mrf.mxu0
  %456 = vmatprep.mubr.bf16.mxu0 0
  %457 = vmatmul.mubr.bf16.gmra.mxu0 %v298
  %v458 = vpop.f32.mrf.mxu0
  %v459 = vadd.f32 %v326, %v458
  %v460 = vpop.f32.mrf.mxu0
  %v461 = vpop.f32.mrf.mxu0
  %v462 = vadd.f32 %v326, %v461
  %v463 = vpop.f32.mrf.mxu0
  %464 = vmatprep.mubr.bf16.mxu0 0
  %465 = vmatmul.mubr.bf16.gmra.mxu0 %v299
  %v466 = vpop.f32.mrf.mxu0
  %v467 = vadd.f32 %v326, %v466
  %v468 = vpop.f32.mrf.mxu0
  %v469 = vpop.f32.mrf.mxu0
  %v470 = vadd.f32 %v326, %v469
  %v471 = vpop.f32.mrf.mxu0
  %472 = vmatprep.mubr.bf16.mxu0 0
  %473 = vmatmul.mubr.bf16.gmra.mxu0 %v300
  %v474 = vpop.f32.mrf.mxu0
  %v475 = vadd.f32 %v326, %v474
  %v476 = vpop.f32.mrf.mxu0
  %v477 = vpop.f32.mrf.mxu0
  %v478 = vadd.f32 %v326, %v477
  %v479 = vpop.f32.mrf.mxu0
  %480 = vmatprep.mubr.bf16.mxu0 0
  %481 = vmatmul.mubr.bf16.gmra.mxu0 %v301
  %v482 = vpop.f32.mrf.mxu0
  %v483 = vadd.f32 %v326, %v482
  %v484 = vpop.f32.mrf.mxu0
  %v485 = vpop.f32.mrf.mxu0
  %v486 = vadd.f32 %v326, %v485
  %v487 = vpop.f32.mrf.mxu0
  %488 = vmatprep.mubr.bf16.mxu0 0
  %489 = vmatmul.mubr.bf16.gmra.mxu0 %v302
  %v490 = vpop.f32.mrf.mxu0
  %v491 = vadd.f32 %v326, %v490
  %v492 = vpop.f32.mrf.mxu0
  %v493 = vpop.f32.mrf.mxu0
  %v494 = vadd.f32 %v326, %v493
  %v495 = vpop.f32.mrf.mxu0
  %496 = vmatprep.mubr.bf16.mxu0 0
  %497 = vmatmul.mubr.bf16.gmra.mxu0 %v303
  %v498 = vpop.f32.mrf.mxu0
  %v499 = vadd.f32 %v326, %v498
  %v500 = vpop.f32.mrf.mxu0
  %v501 = vpop.f32.mrf.mxu0
  %v502 = vadd.f32 %v326, %v501
  %v503 = vpop.f32.mrf.mxu0
  %504 = vmatprep.mubr.bf16.mxu0 0
  %505 = vmatmul.mubr.bf16.gmra.mxu0 %v304
  %v506 = vpop.f32.mrf.mxu0
  %v507 = vadd.f32 %v326, %v506
  %v508 = vpop.f32.mrf.mxu0
  %v509 = vpop.f32.mrf.mxu0
  %v510 = vadd.f32 %v326, %v509
  %v511 = vpop.f32.mrf.mxu0
  %512 = vdwg.mxu0
  %v513 = vmax.f32 %v411, 0.0
  %v514 = vmax.f32 %v414, 0.0
  %v515 = vmax.f32 %v419, 0.0
  %v516 = vmax.f32 %v422, 0.0
  %v517 = vmax.f32 %v427, 0.0
  %v518 = vmax.f32 %v430, 0.0
  %v519 = vmax.f32 %v435, 0.0
  %v520 = vmax.f32 %v438, 0.0
  %v521 = vmax.f32 %v443, 0.0
  %v522 = vmax.f32 %v446, 0.0
  %v523 = vmax.f32 %v451, 0.0
  %v524 = vmax.f32 %v454, 0.0
  %v525 = vmax.f32 %v459, 0.0
  %v526 = vmax.f32 %v462, 0.0
  %v527 = vmax.f32 %v467, 0.0
  %v528 = vmax.f32 %v470, 0.0
  %v529 = vmax.f32 %v475, 0.0
  %v530 = vmax.f32 %v478, 0.0
  %v531 = vmax.f32 %v483, 0.0
  %v532 = vmax.f32 %v486, 0.0
  %v533 = vmax.f32 %v491, 0.0
  %v534 = vmax.f32 %v494, 0.0
  %v535 = vmax.f32 %v499, 0.0
  %v536 = vmax.f32 %v502, 0.0
  %v537 = vmax.f32 %v507, 0.0
  %v538 = vmax.f32 %v510, 0.0
  %v539 = vpack.c.bf16 %v514, %v513
  %v540 = vpack.c.bf16 %v516, %v515
  %v541 = vpack.c.bf16 %v518, %v517
  %v542 = vpack.c.bf16 %v520, %v519
  %v543 = vpack.c.bf16 %v522, %v521
  %v544 = vpack.c.bf16 %v524, %v523
  %v545 = vpack.c.bf16 %v526, %v525
  %v546 = vpack.c.bf16 %v528, %v527
  %v547 = vpack.c.bf16 %v530, %v529
  %v548 = vpack.c.bf16 %v532, %v531
  %v549 = vpack.c.bf16 %v534, %v533
  %v550 = vpack.c.bf16 %v536, %v535
  %v551 = vpack.c.bf16 %v538, %v537
  %v552 = vld [vmem:[%s5] sm:$0xf]
  %v553 = vld [vmem:[%s5 + $0x4] sm:$0xf]
  %v554 = vld [vmem:[%s5 + $0x8] sm:$0xf]
  %v555 = vld [vmem:[%s5 + $0xc] sm:$0xf]
  %v556 = vld [vmem:[%s5 + $0x10] sm:$0xf]
  %v557 = vld [vmem:[%s5 + $0x14] sm:$0xf]
  %v558 = vld [vmem:[%s5 + $0x18] sm:$0xf]
  %v559 = vld [vmem:[%s5 + $0x1c] sm:$0xf]
  %v560 = vld [vmem:[%s5 + $0x20] sm:$0xf]
  %v561 = vld [vmem:[%s5 + $0x24] sm:$0xf]
  %v562 = vld [vmem:[%s5 + $0x28] sm:$0xf]
  %v563 = vld [vmem:[%s5 + $0x2c] sm:$0xf]
  %v564 = vld [vmem:[%s5 + $0x30] sm:$0xf]
  %v565 = vld [vmem:[%s5 + $0x34] sm:$0xf]
  %v566 = vld [vmem:[%s5 + $0x38] sm:$0xf]
  %v567 = vld [vmem:[%s5 + $0x3c] sm:$0xf]
  %v568 = vld [vmem:[%s6] sm:$0x1]
  %v570 = vlaneseq
  %v571 = vshrl.u32 %v570, 7
  %v572 = vsub.s32 0, %v571
  %v573 = vrot.slane %v568, %v572
  %v591 = vunpack.c.l.b16 %v552
  %v592 = vunpack.c.l.b16 %v553
  %v593 = vunpack.c.l.b16 %v554
  %v594 = vunpack.c.l.b16 %v555
  %v595 = vunpack.c.l.b16 %v556
  %v596 = vunpack.c.l.b16 %v557
  %v597 = vunpack.c.l.b16 %v558
  %v598 = vunpack.c.l.b16 %v559
  %v599 = vunpack.c.l.b16 %v560
  %v600 = vunpack.c.l.b16 %v561
  %v601 = vunpack.c.l.b16 %v562
  %v602 = vunpack.c.l.b16 %v563
  %v603 = vunpack.c.l.b16 %v564
  %v604 = vunpack.c.l.b16 %v565
  %v605 = vunpack.c.l.b16 %v566
  %v606 = vunpack.c.l.b16 %v567
  %v607 = vpack.c.b16 %v592, %v591
  %v608 = vpack.c.b16 %v594, %v593
  %v609 = vpack.c.b16 %v596, %v595
  %v610 = vpack.c.b16 %v598, %v597
  %v611 = vpack.c.b16 %v600, %v599
  %v612 = vpack.c.b16 %v602, %v601
  %v613 = vpack.c.b16 %v604, %v603
  %v614 = vpack.c.b16 %v606, %v605
  %623 = vmatprep.subr.bf16.mxu0 0
  %624 = vmatpush1.bf16.msra.mxu0 %v614
  %625 = vmatprep.subr.bf16.mxu0 0
  %626 = vmatpush1.bf16.msra.mxu0 %v613
  %627 = vmatprep.subr.bf16.mxu0 0
  %628 = vmatpush1.bf16.msra.mxu0 %v612
  %629 = vmatprep.subr.bf16.mxu0 0
  %630 = vmatpush1.bf16.msra.mxu0 %v611
  %631 = vmatprep.subr.bf16.mxu0 0
  %632 = vmatpush1.bf16.msra.mxu0 %v610
  %633 = vmatprep.subr.bf16.mxu0 0
  %634 = vmatpush1.bf16.msra.mxu0 %v609
  %635 = vmatprep.subr.bf16.mxu0 0
  %636 = vmatpush1.bf16.msra.mxu0 %v608
  %637 = vmatprep.subr.bf16.mxu0 0
  %638 = vmatpush1.bf16.msra.mxu0 %v607
  %639 = vmatprep.subr.bf16.mxu0 0
  %640 = vmatpush2.bf16.msra.mxu0 0
  %641 = vmatprep.subr.bf16.mxu0 0
  %642 = vmatpush2.bf16.msra.mxu0 0
  %643 = vmatprep.subr.bf16.mxu0 0
  %644 = vmatpush2.bf16.msra.mxu0 0
  %645 = vmatprep.subr.bf16.mxu0 0
  %646 = vmatpush2.bf16.msra.mxu0 0
  %647 = vmatprep.subr.bf16.mxu0 0
  %648 = vmatpush2.bf16.msra.mxu0 0
  %649 = vmatprep.subr.bf16.mxu0 0
  %650 = vmatpush2.bf16.msra.mxu0 0
  %651 = vmatprep.subr.bf16.mxu0 0
  %652 = vmatpush2.bf16.msra.mxu0 0
  %653 = vmatprep.subr.bf16.mxu0 0
  %654 = vmatpush2.bf16.msra.mxu0 0
  %655 = vmatprep.mubr.bf16.mxu0 0
  %656 = vmatmul.mubr.bf16.gmra.mxu0 %v539
  %v657 = vpop.f32.mrf.mxu0
  %v658 = vadd.f32 %v573, %v657
  %v659 = vpop.f32.mrf.mxu0
  %v660 = vpop.f32.mrf.mxu0
  %v661 = vadd.f32 %v573, %v660
  %v662 = vpop.f32.mrf.mxu0
  %663 = vmatprep.mubr.bf16.mxu0 0
  %664 = vmatmul.mubr.bf16.gmra.mxu0 %v540
  %v665 = vpop.f32.mrf.mxu0
  %v666 = vadd.f32 %v573, %v665
  %v667 = vpop.f32.mrf.mxu0
  %v668 = vpop.f32.mrf.mxu0
  %v669 = vadd.f32 %v573, %v668
  %v670 = vpop.f32.mrf.mxu0
  %671 = vmatprep.mubr.bf16.mxu0 0
  %672 = vmatmul.mubr.bf16.gmra.mxu0 %v541
  %v673 = vpop.f32.mrf.mxu0
  %v674 = vadd.f32 %v573, %v673
  %v675 = vpop.f32.mrf.mxu0
  %v676 = vpop.f32.mrf.mxu0
  %v677 = vadd.f32 %v573, %v676
  %v678 = vpop.f32.mrf.mxu0
  %679 = vmatprep.mubr.bf16.mxu0 0
  %680 = vmatmul.mubr.bf16.gmra.mxu0 %v542
  %v681 = vpop.f32.mrf.mxu0
  %v682 = vadd.f32 %v573, %v681
  %v683 = vpop.f32.mrf.mxu0
  %v684 = vpop.f32.mrf.mxu0
  %v685 = vadd.f32 %v573, %v684
  %v686 = vpop.f32.mrf.mxu0
  %687 = vmatprep.mubr.bf16.mxu0 0
  %688 = vmatmul.mubr.bf16.gmra.mxu0 %v543
  %v689 = vpop.f32.mrf.mxu0
  %v690 = vadd.f32 %v573, %v689
  %v691 = vpop.f32.mrf.mxu0
  %v692 = vpop.f32.mrf.mxu0
  %v693 = vadd.f32 %v573, %v692
  %v694 = vpop.f32.mrf.mxu0
  %695 = vmatprep.mubr.bf16.mxu0 0
  %696 = vmatmul.mubr.bf16.gmra.mxu0 %v544
  %v697 = vpop.f32.mrf.mxu0
  %v698 = vadd.f32 %v573, %v697
  %v699 = vpop.f32.mrf.mxu0
  %v700 = vpop.f32.mrf.mxu0
  %v701 = vadd.f32 %v573, %v700
  %v702 = vpop.f32.mrf.mxu0
  %703 = vmatprep.mubr.bf16.mxu0 0
  %704 = vmatmul.mubr.bf16.gmra.mxu0 %v545
  %v705 = vpop.f32.mrf.mxu0
  %v706 = vadd.f32 %v573, %v705
  %v707 = vpop.f32.mrf.mxu0
  %v708 = vpop.f32.mrf.mxu0
  %v709 = vadd.f32 %v573, %v708
  %v710 = vpop.f32.mrf.mxu0
  %711 = vmatprep.mubr.bf16.mxu0 0
  %712 = vmatmul.mubr.bf16.gmra.mxu0 %v546
  %v713 = vpop.f32.mrf.mxu0
  %v714 = vadd.f32 %v573, %v713
  %v715 = vpop.f32.mrf.mxu0
  %v716 = vpop.f32.mrf.mxu0
  %v717 = vadd.f32 %v573, %v716
  %v718 = vpop.f32.mrf.mxu0
  %719 = vmatprep.mubr.bf16.mxu0 0
  %720 = vmatmul.mubr.bf16.gmra.mxu0 %v547
  %v721 = vpop.f32.mrf.mxu0
  %v722 = vadd.f32 %v573, %v721
  %v723 = vpop.f32.mrf.mxu0
  %v724 = vpop.f32.mrf.mxu0
  %v725 = vadd.f32 %v573, %v724
  %v726 = vpop.f32.mrf.mxu0
  %727 = vmatprep.mubr.bf16.mxu0 0
  %728 = vmatmul.mubr.bf16.gmra.mxu0 %v548
  %v729 = vpop.f32.mrf.mxu0
  %v730 = vadd.f32 %v573, %v729
  %v731 = vpop.f32.mrf.mxu0
  %v732 = vpop.f32.mrf.mxu0
  %v733 = vadd.f32 %v573, %v732
  %v734 = vpop.f32.mrf.mxu0
  %735 = vmatprep.mubr.bf16.mxu0 0
  %736 = vmatmul.mubr.bf16.gmra.mxu0 %v549
  %v737 = vpop.f32.mrf.mxu0
  %v738 = vadd.f32 %v573, %v737
  %v739 = vpop.f32.mrf.mxu0
  %v740 = vpop.f32.mrf.mxu0
  %v741 = vadd.f32 %v573, %v740
  %v742 = vpop.f32.mrf.mxu0
  %743 = vmatprep.mubr.bf16.mxu0 0
  %744 = vmatmul.mubr.bf16.gmra.mxu0 %v550
  %v745 = vpop.f32.mrf.mxu0
  %v746 = vadd.f32 %v573, %v745
  %v747 = vpop.f32.mrf.mxu0
  %v748 = vpop.f32.mrf.mxu0
  %v749 = vadd.f32 %v573, %v748
  %v750 = vpop.f32.mrf.mxu0
  %751 = vmatprep.mubr.bf16.mxu0 0
  %752 = vmatmul.mubr.bf16.gmra.mxu0 %v551
  %v753 = vpop.f32.mrf.mxu0
  %v754 = vadd.f32 %v573, %v753
  %v755 = vpop.f32.mrf.mxu0
  %v756 = vpop.f32.mrf.mxu0
  %v757 = vadd.f32 %v573, %v756
  %v758 = vpop.f32.mrf.mxu0
  %759 = vdwg.mxu0
  %v760 = vpack.c.bf16 %v661, %v658
  %v761 = vpack.c.bf16 %v669, %v666
  %v762 = vpack.c.bf16 %v677, %v674
  %v763 = vpack.c.bf16 %v685, %v682
  %v764 = vpack.c.bf16 %v693, %v690
  %v765 = vpack.c.bf16 %v701, %v698
  %v766 = vpack.c.bf16 %v709, %v706
  %v767 = vpack.c.bf16 %v717, %v714
  %v768 = vpack.c.bf16 %v725, %v722
  %v769 = vpack.c.bf16 %v733, %v730
  %v770 = vpack.c.bf16 %v741, %v738
  %v771 = vpack.c.bf16 %v749, %v746
  %v772 = vpack.c.bf16 %v757, %v754
  %v786 = vunpack.c.l.b16 %v760
  %v787 = vunpack.c.h.b16 %v760
  %v788 = vunpack.c.l.b16 %v761
  %v789 = vunpack.c.h.b16 %v761
  %v790 = vunpack.c.l.b16 %v762
  %v791 = vunpack.c.h.b16 %v762
  %v792 = vunpack.c.l.b16 %v763
  %v793 = vunpack.c.h.b16 %v763
  %v794 = vunpack.c.l.b16 %v764
  %v795 = vunpack.c.h.b16 %v764
  %v796 = vunpack.c.l.b16 %v765
  %v797 = vunpack.c.h.b16 %v765
  %v798 = vunpack.c.l.b16 %v766
  %v799 = vunpack.c.h.b16 %v766
  %v800 = vunpack.c.l.b16 %v767
  %v801 = vunpack.c.h.b16 %v767
  %v802 = vunpack.c.l.b16 %v768
  %v803 = vunpack.c.h.b16 %v768
  %v804 = vunpack.c.l.b16 %v769
  %v805 = vunpack.c.h.b16 %v769
  %v806 = vunpack.c.l.b16 %v770
  %v807 = vunpack.c.h.b16 %v770
  %v808 = vunpack.c.l.b16 %v771
  %v809 = vunpack.c.h.b16 %v771
  %v810 = vunpack.c.l.b16 %v772
  %v811 = vunpack.c.h.b16 %v772
  %v812 = vpack.c.b16 %v786, %v786
  %v813 = vpack.c.b16 %v787, %v787
  %v814 = vpack.c.b16 %v788, %v788
  %v815 = vpack.c.b16 %v789, %v789
  %v816 = vpack.c.b16 %v790, %v790
  %v817 = vpack.c.b16 %v791, %v791
  %v818 = vpack.c.b16 %v792, %v792
  %v819 = vpack.c.b16 %v793, %v793
  %v820 = vpack.c.b16 %v794, %v794
  %v821 = vpack.c.b16 %v795, %v795
  %v822 = vpack.c.b16 %v796, %v796
  %v823 = vpack.c.b16 %v797, %v797
  %v824 = vpack.c.b16 %v798, %v798
  %v825 = vpack.c.b16 %v799, %v799
  %v826 = vpack.c.b16 %v800, %v800
  %v827 = vpack.c.b16 %v801, %v801
  %v828 = vpack.c.b16 %v802, %v802
  %v829 = vpack.c.b16 %v803, %v803
  %v830 = vpack.c.b16 %v804, %v804
  %v831 = vpack.c.b16 %v805, %v805
  %v832 = vpack.c.b16 %v806, %v806
  %v833 = vpack.c.b16 %v807, %v807
  %v834 = vpack.c.b16 %v808, %v808
  %v835 = vpack.c.b16 %v809, %v809
  %v836 = vpack.c.b16 %v810, %v810
  %v837 = vpack.c.b16 %v811, %v811
  %864 = vst [vmem:[%s7] sm:$0xf] %v812
  %865 = vst [vmem:[%s7 + $0x4] sm:$0xf] %v813
  %866 = vst [vmem:[%s7 + $0x8] sm:$0xf] %v814
  %867 = vst [vmem:[%s7 + $0xc] sm:$0xf] %v815
  %868 = vst [vmem:[%s7 + $0x10] sm:$0xf] %v816
  %869 = vst [vmem:[%s7 + $0x14] sm:$0xf] %v817
  %870 = vst [vmem:[%s7 + $0x18] sm:$0xf] %v818
  %871 = vst [vmem:[%s7 + $0x1c] sm:$0xf] %v819
  %872 = vst [vmem:[%s7 + $0x20] sm:$0xf] %v820
  %873 = vst [vmem:[%s7 + $0x24] sm:$0xf] %v821
  %874 = vst [vmem:[%s7 + $0x28] sm:$0xf] %v822
  %875 = vst [vmem:[%s7 + $0x2c] sm:$0xf] %v823
  %876 = vst [vmem:[%s7 + $0x30] sm:$0xf] %v824
  %877 = vst [vmem:[%s7 + $0x34] sm:$0xf] %v825
  %878 = vst [vmem:[%s7 + $0x38] sm:$0xf] %v826
  %879 = vst [vmem:[%s7 + $0x3c] sm:$0xf] %v827
  %880 = vst [vmem:[%s7 + $0x40] sm:$0xf] %v828
  %881 = vst [vmem:[%s7 + $0x44] sm:$0xf] %v829
  %882 = vst [vmem:[%s7 + $0x48] sm:$0xf] %v830
  %883 = vst [vmem:[%s7 + $0x4c] sm:$0xf] %v831
  %884 = vst [vmem:[%s7 + $0x50] sm:$0xf] %v832
  %885 = vst [vmem:[%s7 + $0x54] sm:$0xf] %v833
  %886 = vst [vmem:[%s7 + $0x58] sm:$0xf] %v834
  %887 = vst [vmem:[%s7 + $0x5c] sm:$0xf] %v835
  %888 = vst [vmem:[%s7 + $0x60] sm:$0xf] %v836
  %889 = vst [vmem:[%s7 + $0x64] sm:$0xf] %v837
  // Predicated region
  $region30: #{dqn_forward.1} parent=0 // pred_check
    _
  $region31: #{dqn_forward.1} parent=0 // pred_check_branch
    %891 = sbr.rel (0) target = $region33
  $region32: #{dqn_forward.1} parent=0 // pred_region
    _
  $region33: #{dqn_forward.1} parent=0 // pred_fallthru
    _
  // Predicated region
  $region34: #{dqn_forward.1} parent=0 // pred_check
    _
  $region35: #{dqn_forward.1} parent=0 // pred_check_branch
    %893 = sbr.rel (0) target = $region37
  $region36: #{dqn_forward.1} parent=0 // pred_region
    _
  $region37: #{dqn_forward.1} parent=0 // pred_fallthru
    _

</llo_original>
